<compile_context>
chip_gen: v6e
topology: v6e:2x2x1
jax: 0.10.0
libtpu: 0.0.40
codegen_flags: <defaults>
</compile_context>

<pallas_src>
import functools

import jax
import jax.numpy as jnp
from jax.experimental import pallas as pl
from jax.experimental.pallas import tpu as pltpu

LANE = 128
SUBLANE = 16   # bf16-safe second-minor alignment (also fine for f32)


def _round_up(x, m):
    return ((x + m - 1) // m) * m


def _patch_merging_gemm_kernel(x_ref, w_ref, b_ref, o_ref):
    """One grid step: (tile_m, K) @ (K, n_pad) + bias -> (tile_m, n_pad)."""
    acc = jax.lax.dot_general(
        x_ref[...], w_ref[...],
        dimension_numbers=(((1,), (0,)), ((), ())),
        preferred_element_type=jnp.float32)
    o_ref[...] = (acc + b_ref[...].astype(jnp.float32)).astype(o_ref.dtype)


@functools.partial(jax.jit, static_argnames=("downscaling_factor", "max_tile_m"))
def patch_merging(x, weight, bias, *, downscaling_factor, max_tile_m=512):
    """Pallas TPU forward of the PyTorch PatchMerging module.

    x:      (B, C, H, W)     NCHW activations (bf16 recommended, f32 ok)
    weight: (N, C*df*df)     nn.Linear weight, unfold feature order (c, ki, kj)
    bias:   (N,)             nn.Linear bias
    returns (B, H//df, W//df, N)
    """
    df = downscaling_factor
    B, C, H, W = x.shape
    assert H % df == 0 and W % df == 0, "H, W must be divisible by downscaling_factor"
    new_h, new_w = H // df, W // df
    K = C * df * df
    N = weight.shape[0]
    assert weight.shape == (N, K) and bias.shape == (N,)

    # ---- patch de-interleave (unfold-equivalent), done once in XLA ----------
    # Feature order matches nn.Unfold exactly: f = c*df*df + ki*df + kj,
    # so the Linear weight needs no permutation.
    m_total = B * new_h * new_w
    x_mat = (x.reshape(B, C, new_h, df, new_w, df)
               .transpose(0, 2, 4, 1, 3, 5)            # (B, nh, nw, C, df, df)
               .reshape(m_total, K))

    # ---- tiny weight/bias prep (done once; negligible HBM traffic) ----------
    n_pad = _round_up(N, LANE)                         # lane-dense output stores
    w_k = weight.T.astype(x.dtype)                     # (K, N), MXU dtype = activation dtype
    b_k = bias.astype(jnp.float32).reshape(1, N)       # bias stays f32 for the epilogue
    if n_pad != N:
        w_k = jnp.pad(w_k, ((0, 0), (0, n_pad - N)))
        b_k = jnp.pad(b_k, ((0, 0), (0, n_pad - N)))

    # ---- M tiling: big tiles, zero-pad the tail ------------------------------
    tile_m = min(max_tile_m, _round_up(m_total, SUBLANE))
    m_pad = _round_up(m_total, tile_m)
    if m_pad != m_total:
        x_mat = jnp.pad(x_mat, ((0, m_pad - m_total), (0, 0)))
    grid = (m_pad // tile_m,)

    itemsize = jnp.dtype(x.dtype).itemsize
    cost = pl.CostEstimate(
        flops=2 * m_total * K * N,
        transcendentals=0,
        bytes_accessed=(m_pad * K * itemsize            # activations in
                        + K * n_pad * itemsize          # weight in
                        + n_pad * 4                     # bias in
                        + m_pad * n_pad * itemsize))    # output out

    out = pl.pallas_call(
        _patch_merging_gemm_kernel,
        out_shape=jax.ShapeDtypeStruct((m_pad, n_pad), x.dtype),
        grid=grid,
        in_specs=[
            # Activation row-tile of the de-interleaved patch matrix.
            pl.BlockSpec((tile_m, K), lambda i: (i, 0)),
            # Weight & bias: constant block index -> DMA'd once, VMEM-resident.
            pl.BlockSpec((K, n_pad), lambda i: (0, 0)),
            pl.BlockSpec((1, n_pad), lambda i: (0, 0)),
        ],
        out_specs=pl.BlockSpec((tile_m, n_pad), lambda i: (i, 0)),
        compiler_params=pltpu.CompilerParams(
            # Independent row-tiles -> shard across the 2 TensorCores on v7x.
            dimension_semantics=("parallel",)),
        cost_estimate=cost,
    )(x_mat, w_k, b_k)

    out = out[:m_total, :N].reshape(B, new_h, new_w, N)
    return out


def _reference(x, weight, bias, df):
    """Pure-JAX reference: same math as torch Unfold(df, stride=df) + Linear."""
    B, C, H, W = x.shape
    nh, nw = H // df, W // df
    xu = x.reshape(B, C, nh, df, nw, df)                                  # (b,c,r,ki,q,kj)
    xu = xu.transpose(0, 2, 4, 1, 3, 5).reshape(B, nh, nw, C * df * df)   # f = c*df*df+ki*df+kj
    y = jnp.einsum("bhwk,nk->bhwn", xu.astype(jnp.float32),
                   weight.astype(jnp.float32))
    return (y + bias.astype(jnp.float32)).astype(x.dtype)


if __name__ == "__main__":
    key = jax.random.PRNGKey(0)
    kx, kw, kb = jax.random.split(key, 3)

    # --- test 1: small shapes consistent with the module (NCHW, bf16) --------
    B, C, H, W = 2, 4, 16, 16
    df = 2
    out_channels = 32
    K = C * df * df

    x = jax.random.normal(kx, (B, C, H, W), dtype=jnp.float32).astype(jnp.bfloat16)
    weight = jax.random.normal(kw, (out_channels, K), dtype=jnp.float32) / jnp.sqrt(K)
    bias = jax.random.normal(kb, (out_channels,), dtype=jnp.float32) * 0.1

    y = patch_merging(x, weight, bias, downscaling_factor=df)
    y = jax.block_until_ready(y)

    y_ref = _reference(x, weight, bias, df)
    assert y.shape == (B, H // df, W // df, out_channels), y.shape
    err = float(jnp.max(jnp.abs(y.astype(jnp.float32) - y_ref.astype(jnp.float32))))
    assert err < 1e-1, f"max abs error vs reference: {err}"

    # --- test 2: df=4, odd C, non-128-multiple N, f32 (exercises padding) ----
    B2, C2, H2, W2, df2, N2 = 1, 3, 16, 16, 4, 20
    K2 = C2 * df2 * df2
    x2 = jax.random.normal(kx, (B2, C2, H2, W2), dtype=jnp.float32)
    w2 = jax.random.normal(kw, (N2, K2), dtype=jnp.float32) / jnp.sqrt(K2)
    b2 = jax.random.normal(kb, (N2,), dtype=jnp.float32) * 0.1

    y2 = jax.block_until_ready(patch_merging(x2, w2, b2, downscaling_factor=df2))
    y2_ref = _reference(x2, w2, b2, df2)
    assert y2.shape == (B2, H2 // df2, W2 // df2, N2), y2.shape
    err2 = float(jnp.max(jnp.abs(y2 - y2_ref)))
    assert err2 < 1e-3, f"max abs error vs reference (test 2): {err2}"

    print("KERNEL_OK")
</pallas_src>

<mosaic_0001>
module attributes {stable_mosaic.version = 11 : i64} {
  func.func @_patch_merging_gemm_kernel(%arg0: i32, %arg1: memref<128x16xbf16, #tpu.memory_space<vmem>>, %arg2: memref<16x128xbf16, #tpu.memory_space<vmem>>, %arg3: memref<1x128xf32, #tpu.memory_space<vmem>>, %arg4: memref<128x128xbf16, #tpu.memory_space<vmem>>) attributes {dimension_semantics = [#tpu.dimension_semantics<parallel>], iteration_bounds = array<i64: 1>, scalar_prefetch = 0 : i64, scratch_operands = 0 : i64, tpu.core_type = #tpu.core_type<tc>, window_params = [{transform_indices = @transform_0, window_bounds = array<i64: 128, 16>}, {pipeline_mode = #tpu.pipeline_mode<synchronous>, transform_indices = @transform_1, window_bounds = array<i64: 16, 128>}, {pipeline_mode = #tpu.pipeline_mode<synchronous>, transform_indices = @transform_2, window_bounds = array<i64: 1, 128>}, {transform_indices = @transform_3, window_bounds = array<i64: 128, 128>}]} {
    %c0 = arith.constant 0 : index
    %c0_0 = arith.constant 0 : index
    %0 = vector.load %arg1[%c0, %c0_0] : memref<128x16xbf16, #tpu.memory_space<vmem>>, vector<128x16xbf16>
    %c0_1 = arith.constant 0 : index
    %c0_2 = arith.constant 0 : index
    %1 = vector.load %arg2[%c0_1, %c0_2] : memref<16x128xbf16, #tpu.memory_space<vmem>>, vector<16x128xbf16>
    %cst = arith.constant dense<0.000000e+00> : vector<128x128xf32>
    %2 = tpu.matmul %0, %1, %cst {dimension_numbers = #tpu.dot_dimension_numbers<[1], [0], [0], [1], [0, 0, 1, 1], [], []>} : vector<128x16xbf16>, vector<16x128xbf16>, vector<128x128xf32> -> vector<128x128xf32>
    %c0_3 = arith.constant 0 : index
    %c0_4 = arith.constant 0 : index
    %3 = vector.load %arg3[%c0_3, %c0_4] : memref<1x128xf32, #tpu.memory_space<vmem>>, vector<1x128xf32>
    %4 = vector.broadcast %3 : vector<1x128xf32> to vector<128x128xf32>
    %5 = arith.addf %2, %4 : vector<128x128xf32>
    %6 = arith.truncf %5 : vector<128x128xf32> to vector<128x128xbf16>
    %c0_5 = arith.constant 0 : index
    %c0_6 = arith.constant 0 : index
    %7 = vector.load %arg4[%c0_5, %c0_6] : memref<128x128xbf16, #tpu.memory_space<vmem>>, vector<128x128xbf16>
    tpu.vector_store %arg4[%c0_5, %c0_6], %6 {strides = array<i32>} : memref<128x128xbf16, #tpu.memory_space<vmem>>, vector<128x128xbf16>,
    return
  }
  func.func @transform_0(%arg0: i32) -> (i32, i32) {
    %c0_i32 = arith.constant 0 : i32
    %c0_i32_0 = arith.constant 0 : i32
    return %arg0, %c0_i32 : i32, i32
  }
  func.func @transform_1(%arg0: i32) -> (i32, i32) {
    %c0_i32 = arith.constant 0 : i32
    %c0_i32_0 = arith.constant 0 : i32
    %c0_i32_1 = arith.constant 0 : i32
    return %c0_i32, %c0_i32_0 : i32, i32
  }
  func.func @transform_2(%arg0: i32) -> (i32, i32) {
    %c0_i32 = arith.constant 0 : i32
    %c0_i32_0 = arith.constant 0 : i32
    %c0_i32_1 = arith.constant 0 : i32
    return %c0_i32, %c0_i32_0 : i32, i32
  }
  func.func @transform_3(%arg0: i32) -> (i32, i32) {
    %c0_i32 = arith.constant 0 : i32
    %c0_i32_0 = arith.constant 0 : i32
    return %arg0, %c0_i32 : i32, i32
  }
}

</mosaic_0001>

<llo_original>
// kernel: patch_merging.1
$region0: #{patch_merging.1}
  #allocation0 [shape = 'u32[]', space=smem, size = 0x4, offset = 0x4, fixed_abs, tag = 'smem constant byte address 0x4 - core index']
  #allocation1 [shape = 'u32[144,128]{1,0:T(1,128)}', space=vmem, size = 0x12000, scoped, tag = 'internal scratch']
  %s0 = inlined_call_operand.vmem [shape: bf16[128,16], index: 0, kind: input, shape index: {}]
  %s1 = inlined_call_operand.vmem [shape: bf16[16,128], index: 1, kind: input, shape index: {}]
  %s2 = inlined_call_operand.vmem [shape: f32[1,128], index: 2, kind: input, shape index: {}]
  %s3 = inlined_call_operand.hbm [shape: bf16[128,128], index: 3, kind: output, shape index: {}]
  %s4 = sld [smem:[#allocation0]]
  $region22: #{patch_merging.1} parent=0
    _
  %s6 = ssub.s32 1, %s4
  %s7 = scalar_select 0, %s6, %s4
  $region1: #{patch_merging.1} parent=0
    #allocation2 [shape = 'u8[32768]{0}', space=vmem, size = 0x8000, scoped, tag = 'output window, operand 0, single buffered']
    #allocation3 [shape = 's32[1]{0}', space=sflag, size = 0x4, scoped, tag = 'scoped memory for patch_merging.1']
    %8 = vsyncpa [#allocation3], 0
    // Predicated region
    $region2: #{patch_merging.1} parent=1 // pred_check
      _
    $region3: #{patch_merging.1} parent=1 // pred_check_branch
      %10 = sbr.rel (0) target = $region5
    $region4: #{patch_merging.1} parent=1 // pred_region
      _
    $region5: #{patch_merging.1} parent=1 // pred_fallthru
      _
    // Predicated region
    $region6: #{patch_merging.1} parent=1 // pred_check
      _
    $region7: #{patch_merging.1} parent=1 // pred_check_branch
      %12 = sbr.rel (0) target = $region9
    $region8: #{patch_merging.1} parent=1 // pred_region
      _
    $region9: #{patch_merging.1} parent=1 // pred_fallthru
      _
    // Predicated region
    $region10: #{patch_merging.1} parent=1 // pred_check
      _
    $region11: #{patch_merging.1} parent=1 // pred_check_branch
      %14 = sbr.rel (0) target = $region13
    $region12: #{patch_merging.1} parent=1 // pred_region
      _
    $region13: #{patch_merging.1} parent=1 // pred_fallthru
      _
    %v16 = vld [vmem:[%s0] sm:$0xf]
    %v17 = vld [vmem:[%s0 + $0x4] sm:$0xf]
    %v18 = vld [vmem:[%s0 + $0x8] sm:$0xf]
    %v19 = vld [vmem:[%s0 + $0xc] sm:$0xf]
    %v20 = vld [vmem:[%s0 + $0x10] sm:$0xf]
    %v21 = vld [vmem:[%s0 + $0x14] sm:$0xf]
    %v22 = vld [vmem:[%s0 + $0x18] sm:$0xf]
    %v23 = vld [vmem:[%s0 + $0x1c] sm:$0xf]
    %v24 = vld [vmem:[%s0 + $0x20] sm:$0xf]
    %v25 = vld [vmem:[%s0 + $0x24] sm:$0xf]
    %v26 = vld [vmem:[%s0 + $0x28] sm:$0xf]
    %v27 = vld [vmem:[%s0 + $0x2c] sm:$0xf]
    %v28 = vld [vmem:[%s0 + $0x30] sm:$0xf]
    %v29 = vld [vmem:[%s0 + $0x34] sm:$0xf]
    %v30 = vld [vmem:[%s0 + $0x38] sm:$0xf]
    %v31 = vld [vmem:[%s0 + $0x3c] sm:$0xf]
    %v32 = vld [vmem:[%s1] sm:$0xf]
    %v33 = vld [vmem:[%s1 + $0x4] sm:$0xf]
    %v34 = vld [vmem:[%s2] sm:$0x1]
    %v36 = vlaneseq
    %v37 = vshrl.u32 %v36, 7
    %v38 = vsub.s32 0, %v37
    %v39 = vrot.slane %v34, %v38
    %v57 = vunpack.c.l.b16 %v16
    %v58 = vunpack.c.l.b16 %v17
    %v59 = vunpack.c.l.b16 %v18
    %v60 = vunpack.c.l.b16 %v19
    %v61 = vunpack.c.l.b16 %v20
    %v62 = vunpack.c.l.b16 %v21
    %v63 = vunpack.c.l.b16 %v22
    %v64 = vunpack.c.l.b16 %v23
    %v65 = vunpack.c.l.b16 %v24
    %v66 = vunpack.c.l.b16 %v25
    %v67 = vunpack.c.l.b16 %v26
    %v68 = vunpack.c.l.b16 %v27
    %v69 = vunpack.c.l.b16 %v28
    %v70 = vunpack.c.l.b16 %v29
    %v71 = vunpack.c.l.b16 %v30
    %v72 = vunpack.c.l.b16 %v31
    %v73 = vpack.c.b16 %v58, %v57
    %v74 = vpack.c.b16 %v60, %v59
    %v75 = vpack.c.b16 %v62, %v61
    %v76 = vpack.c.b16 %v64, %v63
    %v77 = vpack.c.b16 %v66, %v65
    %v78 = vpack.c.b16 %v68, %v67
    %v79 = vpack.c.b16 %v70, %v69
    %v80 = vpack.c.b16 %v72, %v71
    %v83 = vunpack.c.l.b16 %v32
    %v84 = vunpack.c.l.b16 %v33
    %v85 = vpack.c.b16 %v84, %v83
    %vm87 = vcmask 130048
    %v89 = vsel %vm87, %v73, 0
    %v92 = vsel %vm87, %v74, 0
    %v95 = vsel %vm87, %v75, 0
    %v98 = vsel %vm87, %v76, 0
    %v101 = vsel %vm87, %v77, 0
    %v104 = vsel %vm87, %v78, 0
    %v107 = vsel %vm87, %v79, 0
    %v110 = vsel %vm87, %v80, 0
    %112 = vmatprep.subr.bf16.mxu0 0
    %113 = vmatpush1.bf16.msra.mxu0 0
    %114 = vmatprep.subr.bf16.mxu0 0
    %115 = vmatpush1.bf16.msra.mxu0 0
    %116 = vmatprep.subr.bf16.mxu0 0
    %117 = vmatpush1.bf16.msra.mxu0 0
    %118 = vmatprep.subr.bf16.mxu0 0
    %119 = vmatpush1.bf16.msra.mxu0 0
    %120 = vmatprep.subr.bf16.mxu0 0
    %121 = vmatpush1.bf16.msra.mxu0 0
    %122 = vmatprep.subr.bf16.mxu0 0
    %123 = vmatpush1.bf16.msra.mxu0 0
    %124 = vmatprep.subr.bf16.mxu0 0
    %125 = vmatpush1.bf16.msra.mxu0 0
    %126 = vmatprep.subr.bf16.mxu0 0
    %127 = vmatpush1.bf16.msra.mxu0 %v85
    %128 = vmatprep.subr.bf16.mxu0 0
    %129 = vmatpush2.bf16.msra.mxu0 0
    %130 = vmatprep.subr.bf16.mxu0 0
    %131 = vmatpush2.bf16.msra.mxu0 0
    %132 = vmatprep.subr.bf16.mxu0 0
    %133 = vmatpush2.bf16.msra.mxu0 0
    %134 = vmatprep.subr.bf16.mxu0 0
    %135 = vmatpush2.bf16.msra.mxu0 0
    %136 = vmatprep.subr.bf16.mxu0 0
    %137 = vmatpush2.bf16.msra.mxu0 0
    %138 = vmatprep.subr.bf16.mxu0 0
    %139 = vmatpush2.bf16.msra.mxu0 0
    %140 = vmatprep.subr.bf16.mxu0 0
    %141 = vmatpush2.bf16.msra.mxu0 0
    %142 = vmatprep.subr.bf16.mxu0 0
    %143 = vmatpush2.bf16.msra.mxu0 0
    %144 = vmatprep.mubr.bf16.mxu0 0
    %145 = vmatmul.mubr.bf16.gmra.mxu0 %v89
    %v146 = vpop.f32.mrf.mxu0
    %v147 = vadd.f32 %v39, %v146
    %v148 = vpop.f32.mrf.mxu0
    %v149 = vpop.f32.mrf.mxu0
    %v150 = vadd.f32 %v39, %v149
    %v151 = vpop.f32.mrf.mxu0
    %152 = vmatprep.mubr.bf16.mxu0 0
    %153 = vmatmul.mubr.bf16.gmra.mxu0 %v92
    %v154 = vpop.f32.mrf.mxu0
    %v155 = vadd.f32 %v39, %v154
    %v156 = vpop.f32.mrf.mxu0
    %v157 = vpop.f32.mrf.mxu0
    %v158 = vadd.f32 %v39, %v157
    %v159 = vpop.f32.mrf.mxu0
    %160 = vmatprep.mubr.bf16.mxu0 0
    %161 = vmatmul.mubr.bf16.gmra.mxu0 %v95
    %v162 = vpop.f32.mrf.mxu0
    %v163 = vadd.f32 %v39, %v162
    %v164 = vpop.f32.mrf.mxu0
    %v165 = vpop.f32.mrf.mxu0
    %v166 = vadd.f32 %v39, %v165
    %v167 = vpop.f32.mrf.mxu0
    %168 = vmatprep.mubr.bf16.mxu0 0
    %169 = vmatmul.mubr.bf16.gmra.mxu0 %v98
    %v170 = vpop.f32.mrf.mxu0
    %v171 = vadd.f32 %v39, %v170
    %v172 = vpop.f32.mrf.mxu0
    %v173 = vpop.f32.mrf.mxu0
    %v174 = vadd.f32 %v39, %v173
    %v175 = vpop.f32.mrf.mxu0
    %176 = vmatprep.mubr.bf16.mxu0 0
    %177 = vmatmul.mubr.bf16.gmra.mxu0 %v101
    %v178 = vpop.f32.mrf.mxu0
    %v179 = vadd.f32 %v39, %v178
    %v180 = vpop.f32.mrf.mxu0
    %v181 = vpop.f32.mrf.mxu0
    %v182 = vadd.f32 %v39, %v181
    %v183 = vpop.f32.mrf.mxu0
    %184 = vmatprep.mubr.bf16.mxu0 0
    %185 = vmatmul.mubr.bf16.gmra.mxu0 %v104
    %v186 = vpop.f32.mrf.mxu0
    %v187 = vadd.f32 %v39, %v186
    %v188 = vpop.f32.mrf.mxu0
    %v189 = vpop.f32.mrf.mxu0
    %v190 = vadd.f32 %v39, %v189
    %v191 = vpop.f32.mrf.mxu0
    %192 = vmatprep.mubr.bf16.mxu0 0
    %193 = vmatmul.mubr.bf16.gmra.mxu0 %v107
    %v194 = vpop.f32.mrf.mxu0
    %v195 = vadd.f32 %v39, %v194
    %v196 = vpop.f32.mrf.mxu0
    %v197 = vpop.f32.mrf.mxu0
    %v198 = vadd.f32 %v39, %v197
    %v199 = vpop.f32.mrf.mxu0
    %200 = vmatprep.mubr.bf16.mxu0 0
    %201 = vmatmul.mubr.bf16.gmra.mxu0 %v110
    %v202 = vpop.f32.mrf.mxu0
    %v203 = vadd.f32 %v39, %v202
    %v204 = vpop.f32.mrf.mxu0
    %v205 = vpop.f32.mrf.mxu0
    %v206 = vadd.f32 %v39, %v205
    %v207 = vpop.f32.mrf.mxu0
    %208 = vdwg.mxu0
    %v209 = vpack.c.bf16 %v150, %v147
    %v210 = vpack.c.bf16 %v158, %v155
    %v211 = vpack.c.bf16 %v166, %v163
    %v212 = vpack.c.bf16 %v174, %v171
    %v213 = vpack.c.bf16 %v182, %v179
    %v214 = vpack.c.bf16 %v190, %v187
    %v215 = vpack.c.bf16 %v198, %v195
    %v216 = vpack.c.bf16 %v206, %v203
    %v225 = vunpack.c.l.b16 %v209
    %v226 = vunpack.c.h.b16 %v209
    %v227 = vunpack.c.l.b16 %v210
    %v228 = vunpack.c.h.b16 %v210
    %v229 = vunpack.c.l.b16 %v211
    %v230 = vunpack.c.h.b16 %v211
    %v231 = vunpack.c.l.b16 %v212
    %v232 = vunpack.c.h.b16 %v212
    %v233 = vunpack.c.l.b16 %v213
    %v234 = vunpack.c.h.b16 %v213
    %v235 = vunpack.c.l.b16 %v214
    %v236 = vunpack.c.h.b16 %v214
    %v237 = vunpack.c.l.b16 %v215
    %v238 = vunpack.c.h.b16 %v215
    %v239 = vunpack.c.l.b16 %v216
    %v240 = vunpack.c.h.b16 %v216
    %v241 = vpack.c.b16 %v225, %v225
    %v242 = vpack.c.b16 %v226, %v226
    %v243 = vpack.c.b16 %v227, %v227
    %v244 = vpack.c.b16 %v228, %v228
    %v245 = vpack.c.b16 %v229, %v229
    %v246 = vpack.c.b16 %v230, %v230
    %v247 = vpack.c.b16 %v231, %v231
    %v248 = vpack.c.b16 %v232, %v232
    %v249 = vpack.c.b16 %v233, %v233
    %v250 = vpack.c.b16 %v234, %v234
    %v251 = vpack.c.b16 %v235, %v235
    %v252 = vpack.c.b16 %v236, %v236
    %v253 = vpack.c.b16 %v237, %v237
    %v254 = vpack.c.b16 %v238, %v238
    %v255 = vpack.c.b16 %v239, %v239
    %v256 = vpack.c.b16 %v240, %v240
    %273 = vst [vmem:[#allocation2] sm:$0xf] %v241
    %274 = vst [vmem:[#allocation2 + $0x4] sm:$0xf] %v242
    %275 = vst [vmem:[#allocation2 + $0x8] sm:$0xf] %v243
    %276 = vst [vmem:[#allocation2 + $0xc] sm:$0xf] %v244
    %277 = vst [vmem:[#allocation2 + $0x10] sm:$0xf] %v245
    %278 = vst [vmem:[#allocation2 + $0x14] sm:$0xf] %v246
    %279 = vst [vmem:[#allocation2 + $0x18] sm:$0xf] %v247
    %280 = vst [vmem:[#allocation2 + $0x1c] sm:$0xf] %v248
    %281 = vst [vmem:[#allocation2 + $0x20] sm:$0xf] %v249
    %282 = vst [vmem:[#allocation2 + $0x24] sm:$0xf] %v250
    %283 = vst [vmem:[#allocation2 + $0x28] sm:$0xf] %v251
    %284 = vst [vmem:[#allocation2 + $0x2c] sm:$0xf] %v252
    %285 = vst [vmem:[#allocation2 + $0x30] sm:$0xf] %v253
    %286 = vst [vmem:[#allocation2 + $0x34] sm:$0xf] %v254
    %287 = vst [vmem:[#allocation2 + $0x38] sm:$0xf] %v255
    %288 = vst [vmem:[#allocation2 + $0x3c] sm:$0xf] %v256
    // Predicated region
    $region14: #{patch_merging.1} parent=1 // pred_check
      _
    $region15: #{patch_merging.1} parent=1 // pred_check_branch
      %290 = sbr.rel (0) target = $region17
    $region16: #{patch_merging.1} parent=1 // pred_region
      %s292 = ssub.s32 1024, 1024
      %293 = vsyncadd [#allocation3], %s292
      %s294 = sshll.u32 [#allocation2], 4
      %s295 = int_to_ptr.vmem [resolvable:$true] %s294
      %300 = dma.vmem_to_hbm [thread:$0]  %s295, 1024, %s3, [#allocation3], 64, 64, 4
    $region17: #{patch_merging.1} parent=1 // pred_fallthru
      _
    // Predicated region
    $region18: #{patch_merging.1} parent=1 // pred_check
      _
    $region19: #{patch_merging.1} parent=1 // pred_check_branch
      %302 = sbr.rel (0) target = $region21
    $region20: #{patch_merging.1} parent=1 // pred_region
      %303 = dma.done [#allocation3], 1024
    $region21: #{patch_merging.1} parent=1 // pred_fallthru
      _
    %304 = vsyncpa [#allocation3], 1

</llo_original>
